<compile_context>
chip_gen: v6e
topology: v6e:2x2x1
jax: 0.10.0
libtpu: 0.0.40
codegen_flags: <defaults>
</compile_context>

<pallas_src>
from functools import partial

import jax
import jax.numpy as jnp
from jax.experimental import pallas as pl
from jax.experimental.pallas import tpu as pltpu


def _policy_kernel(xT_ref, w1T_ref, b1_ref, w2T_ref, b2_ref, out_ref,
                   *, two_actions):
    """Feature-major forward.

    xT_ref:  (obs, Bt)      w1T_ref: (hidden, obs)   b1_ref: (hidden, 1)
    w2T_ref: (A, hidden)    b2_ref:  (A, 1)          out_ref: (A, Bt)
    """
    # ---- lin1 on the MXU: h = W1^T @ x^T + b1 -> (hidden, Bt) ----
    h = jnp.dot(w1T_ref[...], xT_ref[...], preferred_element_type=jnp.float32)
    h = h + b1_ref[...]                                   # broadcast over lanes

    # ---- dropout (eval mode: identity) + ReLU ----
    h = jnp.maximum(h, 0.0)

    # ---- lin2 on the MXU: scores = W2^T @ h + b2 -> (A, Bt) ----
    scores = jnp.dot(w2T_ref[...], h, preferred_element_type=jnp.float32)
    scores = scores + b2_ref[...]

    # ---- softmax over the action (sublane) axis ----
    if two_actions:
        # softmax over 2 actions == sigmoid of the score difference.
        # Clip so exp(-d) can never overflow; p1 = 1 - p0 guarantees sum == 1.
        d = scores[0:1, :] - scores[1:2, :]               # (1, Bt)
        d = jnp.clip(d, -30.0, 30.0)
        p0 = 1.0 / (1.0 + jnp.exp(-d))
        p1 = 1.0 - p0
        probs = jnp.concatenate([p0, p1], axis=0)         # (2, Bt)
    else:
        m = jnp.max(scores, axis=0, keepdims=True)
        e = jnp.exp(scores - m)
        probs = e / jnp.sum(e, axis=0, keepdims=True)

    out_ref[...] = probs.astype(out_ref.dtype)


def policy_forward(x, w1, b1, w2, b2, *, batch_tile=2048):
    """x: [B, obs]; w1: [obs, hidden]; b1: [1, hidden]; w2: [hidden, A]; b2: [1, A].

    Returns softmax action probabilities [B, A] (f32).
    """
    B, obs = x.shape
    hidden = w1.shape[1]
    A = w2.shape[1]
    assert w1.shape == (obs, hidden)
    assert w2.shape == (hidden, A)

    # Feature-major (batch-in-lanes) operands: lane-dense DMAs and stores.
    xT = jnp.asarray(x, jnp.float32).T                    # (obs, B)
    w1T = jnp.asarray(w1, jnp.float32).T                  # (hidden, obs)
    w2T = jnp.asarray(w2, jnp.float32).T                  # (A, hidden)
    b1c = jnp.asarray(b1, jnp.float32).reshape(hidden, 1)
    b2c = jnp.asarray(b2, jnp.float32).reshape(A, 1)

    kernel = partial(_policy_kernel, two_actions=(A == 2))

    # Keep the tile lane-dense (multiple of 128).
    tile = max(128, ((int(batch_tile) + 127) // 128) * 128)

    if B <= tile:
        # Small batch: single un-pipelined invocation; whole arrays (a few KB)
        # live in VMEM for the duration of the call.
        vmem = pl.BlockSpec(memory_space=pltpu.MemorySpace.VMEM)
        outT = pl.pallas_call(
            kernel,
            out_shape=jax.ShapeDtypeStruct((A, B), jnp.float32),
            in_specs=[vmem, vmem, vmem, vmem, vmem],
            out_specs=vmem,
        )(xT, w1T, b1c, w2T, b2c)
        return outT.T

    # Batched path: grid over the batch-lane axis (>= 2 steps by construction,
    # "parallel" so both TensorCores are used on v7x).  Ragged B is padded up
    # to a tile multiple and sliced off afterwards — bounded VMEM for any B.
    n_tiles = pl.cdiv(B, tile)
    Bp = n_tiles * tile
    if Bp != B:
        xT = jnp.pad(xT, ((0, 0), (0, Bp - B)))

    outT = pl.pallas_call(
        kernel,
        out_shape=jax.ShapeDtypeStruct((A, Bp), jnp.float32),
        grid=(n_tiles,),
        in_specs=[
            pl.BlockSpec((obs, tile), lambda i: (0, i)),       # x^T tile (lane-dense)
            pl.BlockSpec((hidden, obs), lambda i: (0, 0)),     # resident weights
            pl.BlockSpec((hidden, 1), lambda i: (0, 0)),
            pl.BlockSpec((A, hidden), lambda i: (0, 0)),
            pl.BlockSpec((A, 1), lambda i: (0, 0)),
        ],
        out_specs=pl.BlockSpec((A, tile), lambda i: (0, i)),   # lane-dense store
        compiler_params=pltpu.CompilerParams(
            dimension_semantics=("parallel",)),
    )(xT, w1T, b1c, w2T, b2c)
    return outT[:, :B].T


if __name__ == "__main__":
    # Small, CartPole-like shapes: observation_space=4, action_space=2, batch=8.
    batch = 8
    observation_space = 4
    hidden = 128
    action_space = 2

    key = jax.random.PRNGKey(0)
    kx, k1, kb1, k2, kb2, kxb = jax.random.split(key, 6)

    x = jax.random.normal(kx, (batch, observation_space), dtype=jnp.float32)

    # Deterministic parameter init (PyTorch-Linear-like uniform bounds).
    bound1 = 1.0 / float(jnp.sqrt(observation_space))
    w1 = jax.random.uniform(k1, (observation_space, hidden), jnp.float32,
                            minval=-bound1, maxval=bound1)
    b1 = jax.random.uniform(kb1, (1, hidden), jnp.float32,
                            minval=-bound1, maxval=bound1)

    bound2 = 1.0 / float(jnp.sqrt(hidden))
    w2 = jax.random.uniform(k2, (hidden, action_space), jnp.float32,
                            minval=-bound2, maxval=bound2)
    b2 = jax.random.uniform(kb2, (1, action_space), jnp.float32,
                            minval=-bound2, maxval=bound2)

    def ref_forward(xv):
        h = jnp.maximum(xv @ w1 + b1, 0.0)
        return jax.nn.softmax(h @ w2 + b2, axis=1)

    # --- small batch: no-grid, whole-array-in-VMEM path ---
    probs = jax.block_until_ready(policy_forward(x, w1, b1, w2, b2))
    ref = ref_forward(x)
    assert probs.shape == (batch, action_space)
    assert jnp.allclose(probs, ref, atol=1e-3, rtol=1e-3)
    assert jnp.allclose(jnp.sum(probs, axis=1), 1.0, atol=1e-3)

    # --- larger (ragged) batch: parallel-grid path with padded last tile ---
    big_batch = 1000
    xb = jax.random.normal(kxb, (big_batch, observation_space), dtype=jnp.float32)
    probs_b = jax.block_until_ready(
        policy_forward(xb, w1, b1, w2, b2, batch_tile=256))
    ref_b = ref_forward(xb)
    assert probs_b.shape == (big_batch, action_space)
    assert jnp.allclose(probs_b, ref_b, atol=1e-3, rtol=1e-3)
    assert jnp.allclose(jnp.sum(probs_b, axis=1), 1.0, atol=1e-3)

    print("KERNEL_OK")
</pallas_src>

<mosaic_0001>
module attributes {stable_mosaic.version = 11 : i64} {
  func.func @_policy_kernel(%arg0: memref<4x8xf32, #tpu.memory_space<vmem>>, %arg1: memref<128x4xf32, #tpu.memory_space<vmem>>, %arg2: memref<128x1xf32, #tpu.memory_space<vmem>>, %arg3: memref<2x128xf32, #tpu.memory_space<vmem>>, %arg4: memref<2x1xf32, #tpu.memory_space<vmem>>, %arg5: memref<2x8xf32, #tpu.memory_space<vmem>>) attributes {dimension_semantics = [], scalar_prefetch = 0 : i64, scratch_operands = 0 : i64, tpu.core_type = #tpu.core_type<tc>} {
    %c0 = arith.constant 0 : index
    %c0_0 = arith.constant 0 : index
    %0 = vector.load %arg1[%c0, %c0_0] : memref<128x4xf32, #tpu.memory_space<vmem>>, vector<128x4xf32>
    %c0_1 = arith.constant 0 : index
    %c0_2 = arith.constant 0 : index
    %1 = vector.load %arg0[%c0_1, %c0_2] : memref<4x8xf32, #tpu.memory_space<vmem>>, vector<4x8xf32>
    %cst = arith.constant dense<0.000000e+00> : vector<128x8xf32>
    %2 = tpu.matmul %0, %1, %cst {dimension_numbers = #tpu.dot_dimension_numbers<[1], [0], [0], [1], [0, 0, 1, 1], [], []>} : vector<128x4xf32>, vector<4x8xf32>, vector<128x8xf32> -> vector<128x8xf32>
    %c0_3 = arith.constant 0 : index
    %c0_4 = arith.constant 0 : index
    %3 = vector.load %arg2[%c0_3, %c0_4] : memref<128x1xf32, #tpu.memory_space<vmem>>, vector<128x1xf32>
    %4 = vector.broadcast %3 : vector<128x1xf32> to vector<128x8xf32>
    %5 = arith.addf %2, %4 : vector<128x8xf32>
    %cst_5 = arith.constant 0.000000e+00 : f32
    %6 = vector.broadcast %cst_5 : f32 to vector<128x8xf32>
    %7 = arith.maximumf %5, %6 : vector<128x8xf32>
    %c0_6 = arith.constant 0 : index
    %c0_7 = arith.constant 0 : index
    %8 = vector.load %arg3[%c0_6, %c0_7] : memref<2x128xf32, #tpu.memory_space<vmem>>, vector<2x128xf32>
    %cst_8 = arith.constant dense<0.000000e+00> : vector<2x8xf32>
    %9 = tpu.matmul %8, %7, %cst_8 {dimension_numbers = #tpu.dot_dimension_numbers<[1], [0], [0], [1], [0, 0, 1, 1], [], []>} : vector<2x128xf32>, vector<128x8xf32>, vector<2x8xf32> -> vector<2x8xf32>
    %c0_9 = arith.constant 0 : index
    %c0_10 = arith.constant 0 : index
    %10 = vector.load %arg4[%c0_9, %c0_10] : memref<2x1xf32, #tpu.memory_space<vmem>>, vector<2x1xf32>
    %11 = vector.broadcast %10 : vector<2x1xf32> to vector<2x8xf32>
    %12 = arith.addf %9, %11 : vector<2x8xf32>
    %13 = vector.extract_strided_slice %12 {offsets = [0, 0], sizes = [1, 8], strides = [1, 1]} : vector<2x8xf32> to vector<1x8xf32>
    %14 = vector.extract_strided_slice %12 {offsets = [1, 0], sizes = [1, 8], strides = [1, 1]} : vector<2x8xf32> to vector<1x8xf32>
    %15 = arith.subf %13, %14 : vector<1x8xf32>
    %cst_11 = arith.constant -3.000000e+01 : f32
    %cst_12 = arith.constant 3.000000e+01 : f32
    %16 = vector.broadcast %cst_11 : f32 to vector<1x8xf32>
    %17 = arith.maximumf %16, %15 : vector<1x8xf32>
    %18 = vector.broadcast %cst_12 : f32 to vector<1x8xf32>
    %19 = arith.minimumf %18, %17 : vector<1x8xf32>
    %cst_13 = arith.constant 0.000000e+00 : f32
    %20 = vector.broadcast %cst_13 : f32 to vector<1x8xf32>
    %21 = arith.subf %20, %19 : vector<1x8xf32>
    %22 = math.exp %21 : vector<1x8xf32>
    %cst_14 = arith.constant 1.000000e+00 : f32
    %23 = vector.broadcast %cst_14 : f32 to vector<1x8xf32>
    %24 = arith.addf %23, %22 : vector<1x8xf32>
    %cst_15 = arith.constant 1.000000e+00 : f32
    %25 = vector.broadcast %cst_15 : f32 to vector<1x8xf32>
    %26 = arith.divf %25, %24 : vector<1x8xf32>
    %cst_16 = arith.constant 1.000000e+00 : f32
    %27 = vector.broadcast %cst_16 : f32 to vector<1x8xf32>
    %28 = arith.subf %27, %26 : vector<1x8xf32>
    %29 = tpu.concatenate %26, %28 in 0 : vector<1x8xf32>, vector<1x8xf32> -> vector<2x8xf32>
    %c0_17 = arith.constant 0 : index
    %c0_18 = arith.constant 0 : index
    %30 = vector.load %arg5[%c0_17, %c0_18] : memref<2x8xf32, #tpu.memory_space<vmem>>, vector<2x8xf32>
    tpu.vector_store %arg5[%c0_17, %c0_18], %29 {strides = array<i32>} : memref<2x8xf32, #tpu.memory_space<vmem>>, vector<2x8xf32>,
    return
  }
}

</mosaic_0001>

<llo_original>
// kernel: tpu_custom_call.1
$region0: #{tpu_custom_call.1}
  #allocation0 [shape = 'u32[]', space=smem, size = 0x4, offset = 0x4, fixed_abs, tag = 'smem constant byte address 0x4 - core index']
  #allocation1 [shape = 'u32[144,128]{1,0:T(1,128)}', space=vmem, size = 0x12000, scoped, tag = 'internal scratch']
  %s0 = inlined_call_operand.vmem [shape: f32[4,8], index: 0, kind: input, shape index: {}]
  %s1 = inlined_call_operand.vmem [shape: f32[128,4], index: 1, kind: input, shape index: {}]
  %s2 = inlined_call_operand.vmem [shape: f32[128,1], index: 2, kind: input, shape index: {}]
  %s3 = inlined_call_operand.vmem [shape: f32[2,128], index: 3, kind: input, shape index: {}]
  %s4 = inlined_call_operand.vmem [shape: f32[2,1], index: 4, kind: input, shape index: {}]
  %s5 = inlined_call_operand.hbm [shape: f32[2,8], index: 5, kind: output, shape index: {}]
  %s6 = sld [smem:[#allocation0]]
  $region30: #{tpu_custom_call.1} parent=0
    _
  %s8 = ssub.s32 1, %s6
  %s9 = scalar_select 0, %s8, %s6
  $region1: #{tpu_custom_call.1} parent=0
    #allocation2 [shape = 'u8[1024]{0}', space=vmem, size = 0x400, scoped, tag = 'output window, operand 0, single buffered']
    #allocation3 [shape = 's32[1]{0}', space=sflag, size = 0x4, scoped, tag = 'scoped memory for tpu_custom_call.1']
    %10 = vsyncpa [#allocation3], 0
    // Predicated region
    $region2: #{tpu_custom_call.1} parent=1 // pred_check
      _
    $region3: #{tpu_custom_call.1} parent=1 // pred_check_branch
      %12 = sbr.rel (0) target = $region5
    $region4: #{tpu_custom_call.1} parent=1 // pred_region
      _
    $region5: #{tpu_custom_call.1} parent=1 // pred_fallthru
      _
    // Predicated region
    $region6: #{tpu_custom_call.1} parent=1 // pred_check
      _
    $region7: #{tpu_custom_call.1} parent=1 // pred_check_branch
      %14 = sbr.rel (0) target = $region9
    $region8: #{tpu_custom_call.1} parent=1 // pred_region
      _
    $region9: #{tpu_custom_call.1} parent=1 // pred_fallthru
      _
    // Predicated region
    $region10: #{tpu_custom_call.1} parent=1 // pred_check
      _
    $region11: #{tpu_custom_call.1} parent=1 // pred_check_branch
      %16 = sbr.rel (0) target = $region13
    $region12: #{tpu_custom_call.1} parent=1 // pred_region
      _
    $region13: #{tpu_custom_call.1} parent=1 // pred_fallthru
      _
    // Predicated region
    $region14: #{tpu_custom_call.1} parent=1 // pred_check
      _
    $region15: #{tpu_custom_call.1} parent=1 // pred_check_branch
      %18 = sbr.rel (0) target = $region17
    $region16: #{tpu_custom_call.1} parent=1 // pred_region
      _
    $region17: #{tpu_custom_call.1} parent=1 // pred_fallthru
      _
    // Predicated region
    $region18: #{tpu_custom_call.1} parent=1 // pred_check
      _
    $region19: #{tpu_custom_call.1} parent=1 // pred_check_branch
      %20 = sbr.rel (0) target = $region21
    $region20: #{tpu_custom_call.1} parent=1 // pred_region
      _
    $region21: #{tpu_custom_call.1} parent=1 // pred_fallthru
      _
    %v21 = vld [vmem:[%s1] sm:$0xff]
    %v22 = vld [vmem:[%s1 + $0x8] sm:$0xff]
    %v23 = vld [vmem:[%s1 + $0x10] sm:$0xff]
    %v24 = vld [vmem:[%s1 + $0x18] sm:$0xff]
    %v25 = vld [vmem:[%s1 + $0x20] sm:$0xff]
    %v26 = vld [vmem:[%s1 + $0x28] sm:$0xff]
    %v27 = vld [vmem:[%s1 + $0x30] sm:$0xff]
    %v28 = vld [vmem:[%s1 + $0x38] sm:$0xff]
    %v29 = vld [vmem:[%s1 + $0x40] sm:$0xff]
    %v30 = vld [vmem:[%s1 + $0x48] sm:$0xff]
    %v31 = vld [vmem:[%s1 + $0x50] sm:$0xff]
    %v32 = vld [vmem:[%s1 + $0x58] sm:$0xff]
    %v33 = vld [vmem:[%s1 + $0x60] sm:$0xff]
    %v34 = vld [vmem:[%s1 + $0x68] sm:$0xff]
    %v35 = vld [vmem:[%s1 + $0x70] sm:$0xff]
    %v36 = vld [vmem:[%s1 + $0x78] sm:$0xff]
    %v37 = vld [vmem:[%s0] sm:$0xf]
    %v38 = vld [vmem:[%s2] sm:$0xff]
    %v39 = vld [vmem:[%s2 + $0x8] sm:$0xff]
    %v40 = vld [vmem:[%s2 + $0x10] sm:$0xff]
    %v41 = vld [vmem:[%s2 + $0x18] sm:$0xff]
    %v42 = vld [vmem:[%s2 + $0x20] sm:$0xff]
    %v43 = vld [vmem:[%s2 + $0x28] sm:$0xff]
    %v44 = vld [vmem:[%s2 + $0x30] sm:$0xff]
    %v45 = vld [vmem:[%s2 + $0x38] sm:$0xff]
    %v46 = vld [vmem:[%s2 + $0x40] sm:$0xff]
    %v47 = vld [vmem:[%s2 + $0x48] sm:$0xff]
    %v48 = vld [vmem:[%s2 + $0x50] sm:$0xff]
    %v49 = vld [vmem:[%s2 + $0x58] sm:$0xff]
    %v50 = vld [vmem:[%s2 + $0x60] sm:$0xff]
    %v51 = vld [vmem:[%s2 + $0x68] sm:$0xff]
    %v52 = vld [vmem:[%s2 + $0x70] sm:$0xff]
    %v53 = vld [vmem:[%s2 + $0x78] sm:$0xff]
    %55 = vset.pattern.permute.xlu0 0
    %56 = vperm.xlu0 %55, %v38
    %v57 = vpop.permute.xlu0 %56
    %60 = vset.pattern.permute.xlu0 0
    %61 = vperm.xlu0 %60, %v39
    %v62 = vpop.permute.xlu0 %61
    %65 = vset.pattern.permute.xlu0 0
    %66 = vperm.xlu0 %65, %v40
    %v67 = vpop.permute.xlu0 %66
    %70 = vset.pattern.permute.xlu0 0
    %71 = vperm.xlu0 %70, %v41
    %v72 = vpop.permute.xlu0 %71
    %75 = vset.pattern.permute.xlu0 0
    %76 = vperm.xlu0 %75, %v42
    %v77 = vpop.permute.xlu0 %76
    %80 = vset.pattern.permute.xlu0 0
    %81 = vperm.xlu0 %80, %v43
    %v82 = vpop.permute.xlu0 %81
    %85 = vset.pattern.permute.xlu0 0
    %86 = vperm.xlu0 %85, %v44
    %v87 = vpop.permute.xlu0 %86
    %90 = vset.pattern.permute.xlu0 0
    %91 = vperm.xlu0 %90, %v45
    %v92 = vpop.permute.xlu0 %91
    %95 = vset.pattern.permute.xlu0 0
    %96 = vperm.xlu0 %95, %v46
    %v97 = vpop.permute.xlu0 %96
    %100 = vset.pattern.permute.xlu0 0
    %101 = vperm.xlu0 %100, %v47
    %v102 = vpop.permute.xlu0 %101
    %105 = vset.pattern.permute.xlu0 0
    %106 = vperm.xlu0 %105, %v48
    %v107 = vpop.permute.xlu0 %106
    %110 = vset.pattern.permute.xlu0 0
    %111 = vperm.xlu0 %110, %v49
    %v112 = vpop.permute.xlu0 %111
    %115 = vset.pattern.permute.xlu0 0
    %116 = vperm.xlu0 %115, %v50
    %v117 = vpop.permute.xlu0 %116
    %120 = vset.pattern.permute.xlu0 0
    %121 = vperm.xlu0 %120, %v51
    %v122 = vpop.permute.xlu0 %121
    %125 = vset.pattern.permute.xlu0 0
    %126 = vperm.xlu0 %125, %v52
    %v127 = vpop.permute.xlu0 %126
    %130 = vset.pattern.permute.xlu0 0
    %131 = vperm.xlu0 %130, %v53
    %v132 = vpop.permute.xlu0 %131
    %vm134 = vcmask 31744
    %v136 = vsel %vm134, %v21, 0
    %v139 = vsel %vm134, %v22, 0
    %v142 = vsel %vm134, %v23, 0
    %v145 = vsel %vm134, %v24, 0
    %v148 = vsel %vm134, %v25, 0
    %v151 = vsel %vm134, %v26, 0
    %v154 = vsel %vm134, %v27, 0
    %v157 = vsel %vm134, %v28, 0
    %v160 = vsel %vm134, %v29, 0
    %v163 = vsel %vm134, %v30, 0
    %v166 = vsel %vm134, %v31, 0
    %v169 = vsel %vm134, %v32, 0
    %v172 = vsel %vm134, %v33, 0
    %v175 = vsel %vm134, %v34, 0
    %v178 = vsel %vm134, %v35, 0
    %v181 = vsel %vm134, %v36, 0
    %vm183 = vcmask 1043456
    %v185 = vsel %vm183, %v37, 0
    %187 = vmatprep.subr.mxu0 0.0
    %188 = vmatpush1.msra.mxu0 0.0
    %189 = vmatprep.subr.mxu0 0.0
    %190 = vmatpush1.msra.mxu0 0.0
    %191 = vmatprep.subr.mxu0 0.0
    %192 = vmatpush1.msra.mxu0 0.0
    %193 = vmatprep.subr.mxu0 0.0
    %194 = vmatpush1.msra.mxu0 0.0
    %195 = vmatprep.subr.mxu0 0.0
    %196 = vmatpush1.msra.mxu0 0.0
    %197 = vmatprep.subr.mxu0 0.0
    %198 = vmatpush1.msra.mxu0 0.0
    %199 = vmatprep.subr.mxu0 0.0
    %200 = vmatpush1.msra.mxu0 0.0
    %201 = vmatprep.subr.mxu0 0.0
    %202 = vmatpush1.msra.mxu0 0.0
    %203 = vmatprep.subr.mxu0 0.0
    %204 = vmatpush1.msra.mxu0 0.0
    %205 = vmatprep.subr.mxu0 0.0
    %206 = vmatpush1.msra.mxu0 0.0
    %207 = vmatprep.subr.mxu0 0.0
    %208 = vmatpush1.msra.mxu0 0.0
    %209 = vmatprep.subr.mxu0 0.0
    %210 = vmatpush1.msra.mxu0 0.0
    %211 = vmatprep.subr.mxu0 0.0
    %212 = vmatpush1.msra.mxu0 0.0
    %213 = vmatprep.subr.mxu0 0.0
    %214 = vmatpush1.msra.mxu0 0.0
    %215 = vmatprep.subr.mxu0 0.0
    %216 = vmatpush1.msra.mxu0 0.0
    %217 = vmatprep.subr.mxu0 0.0
    %218 = vmatpush1.msra.mxu0 %v185
    %219 = vmatprep.subr.mxu0 0.0
    %220 = vmatpush2.msra.mxu0 0.0
    %221 = vmatprep.subr.mxu0 0.0
    %222 = vmatpush2.msra.mxu0 0.0
    %223 = vmatprep.subr.mxu0 0.0
    %224 = vmatpush2.msra.mxu0 0.0
    %225 = vmatprep.subr.mxu0 0.0
    %226 = vmatpush2.msra.mxu0 0.0
    %227 = vmatprep.subr.mxu0 0.0
    %228 = vmatpush2.msra.mxu0 0.0
    %229 = vmatprep.subr.mxu0 0.0
    %230 = vmatpush2.msra.mxu0 0.0
    %231 = vmatprep.subr.mxu0 0.0
    %232 = vmatpush2.msra.mxu0 0.0
    %233 = vmatprep.subr.mxu0 0.0
    %234 = vmatpush2.msra.mxu0 0.0
    %235 = vmatprep.subr.mxu0 0.0
    %236 = vmatpush2.msra.mxu0 0.0
    %237 = vmatprep.subr.mxu0 0.0
    %238 = vmatpush2.msra.mxu0 0.0
    %239 = vmatprep.subr.mxu0 0.0
    %240 = vmatpush2.msra.mxu0 0.0
    %241 = vmatprep.subr.mxu0 0.0
    %242 = vmatpush2.msra.mxu0 0.0
    %243 = vmatprep.subr.mxu0 0.0
    %244 = vmatpush2.msra.mxu0 0.0
    %245 = vmatprep.subr.mxu0 0.0
    %246 = vmatpush2.msra.mxu0 0.0
    %247 = vmatprep.subr.mxu0 0.0
    %248 = vmatpush2.msra.mxu0 0.0
    %249 = vmatprep.subr.mxu0 0.0
    %250 = vmatpush2.msra.mxu0 0.0
    %251 = vmatprep.mubr.f32.mxu0 0.0
    %252 = vmatmul.mubr.f32.gmra.mxu0 %v136
    %v253 = vpop.f32.mrf.mxu0
    %v254 = vadd.f32 %v57, %v253
    %v255 = vpop.f32.mrf.mxu0
    %256 = vmatprep.mubr.f32.mxu0 0.0
    %257 = vmatmul.mubr.f32.gmra.mxu0 %v139
    %v258 = vpop.f32.mrf.mxu0
    %v259 = vadd.f32 %v62, %v258
    %v260 = vpop.f32.mrf.mxu0
    %261 = vmatprep.mubr.f32.mxu0 0.0
    %262 = vmatmul.mubr.f32.gmra.mxu0 %v142
    %v263 = vpop.f32.mrf.mxu0
    %v264 = vadd.f32 %v67, %v263
    %v265 = vpop.f32.mrf.mxu0
    %266 = vmatprep.mubr.f32.mxu0 0.0
    %267 = vmatmul.mubr.f32.gmra.mxu0 %v145
    %v268 = vpop.f32.mrf.mxu0
    %v269 = vadd.f32 %v72, %v268
    %v270 = vpop.f32.mrf.mxu0
    %271 = vmatprep.mubr.f32.mxu0 0.0
    %272 = vmatmul.mubr.f32.gmra.mxu0 %v148
    %v273 = vpop.f32.mrf.mxu0
    %v274 = vadd.f32 %v77, %v273
    %v275 = vpop.f32.mrf.mxu0
    %276 = vmatprep.mubr.f32.mxu0 0.0
    %277 = vmatmul.mubr.f32.gmra.mxu0 %v151
    %v278 = vpop.f32.mrf.mxu0
    %v279 = vadd.f32 %v82, %v278
    %v280 = vpop.f32.mrf.mxu0
    %281 = vmatprep.mubr.f32.mxu0 0.0
    %282 = vmatmul.mubr.f32.gmra.mxu0 %v154
    %v283 = vpop.f32.mrf.mxu0
    %v284 = vadd.f32 %v87, %v283
    %v285 = vpop.f32.mrf.mxu0
    %286 = vmatprep.mubr.f32.mxu0 0.0
    %287 = vmatmul.mubr.f32.gmra.mxu0 %v157
    %v288 = vpop.f32.mrf.mxu0
    %v289 = vadd.f32 %v92, %v288
    %v290 = vpop.f32.mrf.mxu0
    %291 = vmatprep.mubr.f32.mxu0 0.0
    %292 = vmatmul.mubr.f32.gmra.mxu0 %v160
    %v293 = vpop.f32.mrf.mxu0
    %v294 = vadd.f32 %v97, %v293
    %v295 = vpop.f32.mrf.mxu0
    %296 = vmatprep.mubr.f32.mxu0 0.0
    %297 = vmatmul.mubr.f32.gmra.mxu0 %v163
    %v298 = vpop.f32.mrf.mxu0
    %v299 = vadd.f32 %v102, %v298
    %v300 = vpop.f32.mrf.mxu0
    %301 = vmatprep.mubr.f32.mxu0 0.0
    %302 = vmatmul.mubr.f32.gmra.mxu0 %v166
    %v303 = vpop.f32.mrf.mxu0
    %v304 = vadd.f32 %v107, %v303
    %v305 = vpop.f32.mrf.mxu0
    %306 = vmatprep.mubr.f32.mxu0 0.0
    %307 = vmatmul.mubr.f32.gmra.mxu0 %v169
    %v308 = vpop.f32.mrf.mxu0
    %v309 = vadd.f32 %v112, %v308
    %v310 = vpop.f32.mrf.mxu0
    %311 = vmatprep.mubr.f32.mxu0 0.0
    %312 = vmatmul.mubr.f32.gmra.mxu0 %v172
    %v313 = vpop.f32.mrf.mxu0
    %v314 = vadd.f32 %v117, %v313
    %v315 = vpop.f32.mrf.mxu0
    %316 = vmatprep.mubr.f32.mxu0 0.0
    %317 = vmatmul.mubr.f32.gmra.mxu0 %v175
    %v318 = vpop.f32.mrf.mxu0
    %v319 = vadd.f32 %v122, %v318
    %v320 = vpop.f32.mrf.mxu0
    %321 = vmatprep.mubr.f32.mxu0 0.0
    %322 = vmatmul.mubr.f32.gmra.mxu0 %v178
    %v323 = vpop.f32.mrf.mxu0
    %v324 = vadd.f32 %v127, %v323
    %v325 = vpop.f32.mrf.mxu0
    %326 = vmatprep.mubr.f32.mxu0 0.0
    %327 = vmatmul.mubr.f32.gmra.mxu0 %v181
    %v328 = vpop.f32.mrf.mxu0
    %v329 = vadd.f32 %v132, %v328
    %v330 = vpop.f32.mrf.mxu0
    %331 = vdwg.mxu0
    %v332 = vmax.f32 %v254, 0.0
    %v333 = vmax.f32 %v259, 0.0
    %v334 = vmax.f32 %v264, 0.0
    %v335 = vmax.f32 %v269, 0.0
    %v336 = vmax.f32 %v274, 0.0
    %v337 = vmax.f32 %v279, 0.0
    %v338 = vmax.f32 %v284, 0.0
    %v339 = vmax.f32 %v289, 0.0
    %v340 = vmax.f32 %v294, 0.0
    %v341 = vmax.f32 %v299, 0.0
    %v342 = vmax.f32 %v304, 0.0
    %v343 = vmax.f32 %v309, 0.0
    %v344 = vmax.f32 %v314, 0.0
    %v345 = vmax.f32 %v319, 0.0
    %v346 = vmax.f32 %v324, 0.0
    %v347 = vmax.f32 %v329, 0.0
    %v348 = vld [vmem:[%s3] sm:$0x3]
    %v349 = vld [vmem:[%s4] sm:$0x3]
    %351 = vset.pattern.permute.xlu0 0
    %352 = vperm.xlu0 %351, %v349
    %v353 = vpop.permute.xlu0 %352
    %355 = vmatprep.subr.mxu0 0.0
    %356 = vmatpush1.msra.mxu0 %v347
    %357 = vmatprep.subr.mxu0 0.0
    %358 = vmatpush1.msra.mxu0 %v346
    %359 = vmatprep.subr.mxu0 0.0
    %360 = vmatpush1.msra.mxu0 %v345
    %361 = vmatprep.subr.mxu0 0.0
    %362 = vmatpush1.msra.mxu0 %v344
    %363 = vmatprep.subr.mxu0 0.0
    %364 = vmatpush1.msra.mxu0 %v343
    %365 = vmatprep.subr.mxu0 0.0
    %366 = vmatpush1.msra.mxu0 %v342
    %367 = vmatprep.subr.mxu0 0.0
    %368 = vmatpush1.msra.mxu0 %v341
    %369 = vmatprep.subr.mxu0 0.0
    %370 = vmatpush1.msra.mxu0 %v340
    %371 = vmatprep.subr.mxu0 0.0
    %372 = vmatpush1.msra.mxu0 %v339
    %373 = vmatprep.subr.mxu0 0.0
    %374 = vmatpush1.msra.mxu0 %v338
    %375 = vmatprep.subr.mxu0 0.0
    %376 = vmatpush1.msra.mxu0 %v337
    %377 = vmatprep.subr.mxu0 0.0
    %378 = vmatpush1.msra.mxu0 %v336
    %379 = vmatprep.subr.mxu0 0.0
    %380 = vmatpush1.msra.mxu0 %v335
    %381 = vmatprep.subr.mxu0 0.0
    %382 = vmatpush1.msra.mxu0 %v334
    %383 = vmatprep.subr.mxu0 0.0
    %384 = vmatpush1.msra.mxu0 %v333
    %385 = vmatprep.subr.mxu0 0.0
    %386 = vmatpush1.msra.mxu0 %v332
    %387 = vmatprep.subr.mxu0 0.0
    %388 = vmatpush2.msra.mxu0 0.0
    %389 = vmatprep.subr.mxu0 0.0
    %390 = vmatpush2.msra.mxu0 0.0
    %391 = vmatprep.subr.mxu0 0.0
    %392 = vmatpush2.msra.mxu0 0.0
    %393 = vmatprep.subr.mxu0 0.0
    %394 = vmatpush2.msra.mxu0 0.0
    %395 = vmatprep.subr.mxu0 0.0
    %396 = vmatpush2.msra.mxu0 0.0
    %397 = vmatprep.subr.mxu0 0.0
    %398 = vmatpush2.msra.mxu0 0.0
    %399 = vmatprep.subr.mxu0 0.0
    %400 = vmatpush2.msra.mxu0 0.0
    %401 = vmatprep.subr.mxu0 0.0
    %402 = vmatpush2.msra.mxu0 0.0
    %403 = vmatprep.subr.mxu0 0.0
    %404 = vmatpush2.msra.mxu0 0.0
    %405 = vmatprep.subr.mxu0 0.0
    %406 = vmatpush2.msra.mxu0 0.0
    %407 = vmatprep.subr.mxu0 0.0
    %408 = vmatpush2.msra.mxu0 0.0
    %409 = vmatprep.subr.mxu0 0.0
    %410 = vmatpush2.msra.mxu0 0.0
    %411 = vmatprep.subr.mxu0 0.0
    %412 = vmatpush2.msra.mxu0 0.0
    %413 = vmatprep.subr.mxu0 0.0
    %414 = vmatpush2.msra.mxu0 0.0
    %415 = vmatprep.subr.mxu0 0.0
    %416 = vmatpush2.msra.mxu0 0.0
    %417 = vmatprep.subr.mxu0 0.0
    %418 = vmatpush2.msra.mxu0 0.0
    %419 = vmatprep.mubr.f32.mxu0 0.0
    %420 = vmatmul.mubr.f32.gmra.mxu0 %v348
    %v421 = vpop.f32.mrf.mxu0
    %v422 = vadd.f32 %v353, %v421
    %v423 = vpop.f32.mrf.mxu0
    %424 = vdwg.mxu0
    %v426 = vrot.slane %v422, 1
    %v428 = vsub.f32 %v422, %v426
    %v429 = vmax.f32 %v428, -30.0
    %v430 = vmin.f32 %v429, 30.0
    %v431 = vsub.f32 0.0, %v430
    %v432 = vmul.f32 %v431, 1.442695
    %v433 = vpow.pop %v432
    %v434 = vadd.f32 %v433, 1.0
    %v435 = vrcp.pop %v434
    %v436 = vmul.f32 1.0, %v435
    %v437 = vsub.f32 1.0, %v436
    %v439 = vrot.slane %v437, 7
    %vm441 = vcmask 1040384
    %v442 = vsel %vm441, %v436, %v439
    %vm443 = vcmask 58368
    %444 = vst.msk [vmem:[#allocation2] sm:$0x3] %vm443, %v442
    // Predicated region
    $region22: #{tpu_custom_call.1} parent=1 // pred_check
      _
    $region23: #{tpu_custom_call.1} parent=1 // pred_check_branch
      %446 = sbr.rel (0) target = $region25
    $region24: #{tpu_custom_call.1} parent=1 // pred_region
      %s448 = ssub.s32 32, 32
      %449 = vsyncadd [#allocation3], %s448
      %s451 = sshll.u32 [#allocation2], 4
      %s452 = int_to_ptr.vmem [resolvable:$true] %s451
      %454 = dma.vmem_to_hbm [thread:$0]  %s452, 32, %s5, [#allocation3]
    $region25: #{tpu_custom_call.1} parent=1 // pred_fallthru
      _
    // Predicated region
    $region26: #{tpu_custom_call.1} parent=1 // pred_check
      _
    $region27: #{tpu_custom_call.1} parent=1 // pred_check_branch
      %456 = sbr.rel (0) target = $region29
    $region28: #{tpu_custom_call.1} parent=1 // pred_region
      %457 = dma.done [#allocation3], 32
    $region29: #{tpu_custom_call.1} parent=1 // pred_fallthru
      _
    %458 = vsyncpa [#allocation3], 1

</llo_original>
